<compile_context>
chip_gen: v6e
topology: v6e:2x2x1
jax: 0.10.0
libtpu: 0.0.40
codegen_flags: <defaults>
</compile_context>

<pallas_src>
import jax
import jax.numpy as jnp
import numpy as np
from jax.experimental import pallas as pl
from jax.experimental.pallas import tpu as pltpu


def _make_se_kernel(hw_true):
    """Builds the fused SE kernel; hw_true is the real (unpadded) H*W."""
    inv_hw = 1.0 / float(hw_true)

    def _se_kernel(x_ref, w1_ref, b1_ref, w2_ref, b2_ref, o_ref):
        x = x_ref[...]                                   # (bN, C, HWp), native dtype

        # Global average pool over the spatial lane axis (f32 accumulate).
        # Padded lanes (if any) are zero, so dividing by the true H*W is exact.
        pooled = jnp.sum(x.astype(jnp.float32), axis=-1) * inv_hw        # (bN, C)

        # conv_reduce: 1x1 conv == dense layer: (bN, C) @ (C, Sq) + b1, then SiLU.
        h = jnp.dot(pooled, w1_ref[...],
                    preferred_element_type=jnp.float32) + b1_ref[...]
        h = h * jax.nn.sigmoid(h)                        # SiLU (sigmoid on EUP)

        # conv_expand: (bN, Sq) @ (Sq, C) + b2, then sigmoid gate.
        g = jnp.dot(h, w2_ref[...],
                    preferred_element_type=jnp.float32) + b2_ref[...]
        g = jax.nn.sigmoid(g)                            # (bN, C) f32

        # Channel-wise gate.  Gate is cast to x's dtype so the bulk multiply runs
        # in the activation dtype (bf16 stays bf16 on v6e/v7x).
        # TODO(synk): on v5e with bf16 activations, upcast x to f32 here instead
        # (v5e VPU/EUP have no bf16 path).
        o_ref[...] = (x * g.astype(x.dtype)[:, :, None]).astype(o_ref.dtype)

    return _se_kernel


def _pick_block_n(n, c, hw_padded, itemsize, vmem_budget_bytes=24 << 20):
    """Largest divisor of n whose double-buffered in+out tiles fit the budget."""
    per_row = c * hw_padded * itemsize                 # one batch row of x / out
    cap = max(1, vmem_budget_bytes // (4 * per_row))   # 2 input + 2 output buffers
    if n >= 16:
        # Prefer >=2 grid steps (pipelining + v7x megacore) while keeping the
        # matmul M dim >= 8.
        cap = min(cap, n // 2)
    block = 1
    for b in range(1, min(n, cap) + 1):
        if n % b == 0:
            block = b
    return block


def squeeze_excite(x_nchw, w_reduce_oihw, b_reduce, w_expand_oihw, b_expand):
    """Matches SqueezeExcite.forward (1x1 convs with bias, SiLU, Sigmoid gate)."""
    N, C, H, W = x_nchw.shape
    Sq = w_reduce_oihw.shape[0]
    HW = H * W
    HWp = ((HW + 127) // 128) * 128                    # lane-dense (multiple of 128)

    # Free, layout-preserving reshape: NCHW row-major == (N, C, H*W) row-major.
    x3 = x_nchw.reshape(N, C, HW)                      # keep native activation dtype
    if HWp != HW:
        x3 = jnp.pad(x3, ((0, 0), (0, 0), (0, HWp - HW)))

    # 1x1 conv weights (OIHW) -> dense matrices, contraction dim first (f32 math).
    w1 = jnp.transpose(w_reduce_oihw[:, :, 0, 0], (1, 0)).astype(jnp.float32)  # (C, Sq)
    w2 = jnp.transpose(w_expand_oihw[:, :, 0, 0], (1, 0)).astype(jnp.float32)  # (Sq, C)
    b1 = b_reduce.reshape(1, Sq).astype(jnp.float32)
    b2 = b_expand.reshape(1, C).astype(jnp.float32)

    itemsize = x3.dtype.itemsize
    block_n = _pick_block_n(N, C, HWp, itemsize)
    grid = (N // block_n,)

    cost = pl.CostEstimate(
        flops=2 * 2 * N * C * Sq + 3 * N * C * HW,     # two tiny FCs + pool/gate
        transcendentals=N * (Sq + C),                  # SiLU + sigmoid
        bytes_accessed=2 * N * C * HW * itemsize)      # x read once, out written once

    out3 = pl.pallas_call(
        _make_se_kernel(HW),
        out_shape=jax.ShapeDtypeStruct((N, C, HWp), x3.dtype),
        grid=grid,
        in_specs=[
            pl.BlockSpec((block_n, C, HWp), lambda i: (i, 0, 0)),
            pl.BlockSpec((C, Sq), lambda i: (0, 0)),
            pl.BlockSpec((1, Sq), lambda i: (0, 0)),
            pl.BlockSpec((Sq, C), lambda i: (0, 0)),
            pl.BlockSpec((1, C), lambda i: (0, 0)),
        ],
        out_specs=pl.BlockSpec((block_n, C, HWp), lambda i: (i, 0, 0)),
        compiler_params=pltpu.CompilerParams(
            dimension_semantics=("parallel",)),
        cost_estimate=cost,
    )(x3, w1, b1, w2, b2)

    if HWp != HW:
        out3 = out3[:, :, :HW]
    return out3.reshape(N, C, H, W)


def _reference(x, w_reduce, b_reduce, w_expand, b_expand):
    """Pure-JAX reference mirroring the PyTorch forward."""
    xf = x.astype(jnp.float32)
    pooled = xf.mean(axis=(2, 3))                                  # (N, C)
    h = pooled @ w_reduce[:, :, 0, 0].T + b_reduce                 # (N, Sq)
    h = h * jax.nn.sigmoid(h)                                      # SiLU
    g = h @ w_expand[:, :, 0, 0].T + b_expand                      # (N, C)
    g = jax.nn.sigmoid(g)
    return (xf * g[:, :, None, None]).astype(x.dtype)


if __name__ == "__main__":
    key = jax.random.PRNGKey(0)
    k_x, k_w1, k_b1, k_w2, k_b2 = jax.random.split(key, 5)

    # SqueezeExcite(input_c=16, expand_c=32, se_ratio=0.25) -> squeeze_c=4.
    # Forward input x has expand_c channels.  N=16 -> block_n=8, grid=(2,) so
    # the pipelined / megacore path is actually exercised.
    N, C, H, W = 16, 32, 16, 16
    Sq = 4

    x = jax.random.normal(k_x, (N, C, H, W), dtype=jnp.float32)
    w_reduce = jax.random.normal(k_w1, (Sq, C, 1, 1), dtype=jnp.float32) * 0.1  # OIHW
    b_reduce = jax.random.normal(k_b1, (Sq,), dtype=jnp.float32) * 0.1
    w_expand = jax.random.normal(k_w2, (C, Sq, 1, 1), dtype=jnp.float32) * 0.1  # OIHW
    b_expand = jax.random.normal(k_b2, (C,), dtype=jnp.float32) * 0.1

    out = squeeze_excite(x, w_reduce, b_reduce, w_expand, b_expand)
    out = jax.block_until_ready(out)
    assert out.shape == (N, C, H, W) and out.dtype == x.dtype

    ref = _reference(x, w_reduce, b_reduce, w_expand, b_expand)
    np.testing.assert_allclose(np.asarray(out), np.asarray(ref),
                               rtol=1e-4, atol=1e-4)
    print("KERNEL_OK")
</pallas_src>

<mosaic_0001>
module attributes {stable_mosaic.version = 11 : i64} {
  func.func @_se_kernel(%arg0: i32, %arg1: memref<8x32x256xf32, #tpu.memory_space<vmem>>, %arg2: memref<32x4xf32, #tpu.memory_space<vmem>>, %arg3: memref<1x4xf32, #tpu.memory_space<vmem>>, %arg4: memref<4x32xf32, #tpu.memory_space<vmem>>, %arg5: memref<1x32xf32, #tpu.memory_space<vmem>>, %arg6: memref<8x32x256xf32, #tpu.memory_space<vmem>>) attributes {dimension_semantics = [#tpu.dimension_semantics<parallel>], iteration_bounds = array<i64: 2>, scalar_prefetch = 0 : i64, scratch_operands = 0 : i64, tpu.core_type = #tpu.core_type<tc>, window_params = [{transform_indices = @transform_0, window_bounds = array<i64: 8, 32, 256>}, {pipeline_mode = #tpu.pipeline_mode<synchronous>, transform_indices = @transform_1, window_bounds = array<i64: 32, 4>}, {pipeline_mode = #tpu.pipeline_mode<synchronous>, transform_indices = @transform_2, window_bounds = array<i64: 1, 4>}, {pipeline_mode = #tpu.pipeline_mode<synchronous>, transform_indices = @transform_3, window_bounds = array<i64: 4, 32>}, {pipeline_mode = #tpu.pipeline_mode<synchronous>, transform_indices = @transform_4, window_bounds = array<i64: 1, 32>}, {transform_indices = @transform_5, window_bounds = array<i64: 8, 32, 256>}]} {
    %c0 = arith.constant 0 : index
    %c0_0 = arith.constant 0 : index
    %c0_1 = arith.constant 0 : index
    %0 = vector.load %arg1[%c0, %c0_0, %c0_1] : memref<8x32x256xf32, #tpu.memory_space<vmem>>, vector<8x32x256xf32>
    %cst = arith.constant dense<0.000000e+00> : vector<8x32xf32>
    %1 = vector.multi_reduction <add>, %0, %cst [2] : vector<8x32x256xf32> to vector<8x32xf32>
    %cst_2 = arith.constant 3.906250e-03 : f32
    %2 = vector.broadcast %cst_2 : f32 to vector<8x32xf32>
    %3 = arith.mulf %1, %2 : vector<8x32xf32>
    %c0_3 = arith.constant 0 : index
    %c0_4 = arith.constant 0 : index
    %4 = vector.load %arg2[%c0_3, %c0_4] : memref<32x4xf32, #tpu.memory_space<vmem>>, vector<32x4xf32>
    %cst_5 = arith.constant dense<0.000000e+00> : vector<8x4xf32>
    %5 = tpu.matmul %3, %4, %cst_5 {dimension_numbers = #tpu.dot_dimension_numbers<[1], [0], [0], [1], [0, 0, 1, 1], [], []>} : vector<8x32xf32>, vector<32x4xf32>, vector<8x4xf32> -> vector<8x4xf32>
    %c0_6 = arith.constant 0 : index
    %c0_7 = arith.constant 0 : index
    %6 = vector.load %arg3[%c0_6, %c0_7] : memref<1x4xf32, #tpu.memory_space<vmem>>, vector<1x4xf32>
    %7 = vector.broadcast %6 : vector<1x4xf32> to vector<8x4xf32>
    %8 = arith.addf %5, %7 : vector<8x4xf32>
    %9 = arith.negf %8 : vector<8x4xf32>
    %10 = math.exp %9 : vector<8x4xf32>
    %cst_8 = arith.constant 1.000000e+00 : f32
    %11 = vector.broadcast %cst_8 : f32 to vector<8x4xf32>
    %12 = arith.addf %11, %10 : vector<8x4xf32>
    %13 = arith.divf %11, %12 : vector<8x4xf32>
    %14 = arith.mulf %8, %13 : vector<8x4xf32>
    %c0_9 = arith.constant 0 : index
    %c0_10 = arith.constant 0 : index
    %15 = vector.load %arg4[%c0_9, %c0_10] : memref<4x32xf32, #tpu.memory_space<vmem>>, vector<4x32xf32>
    %cst_11 = arith.constant dense<0.000000e+00> : vector<8x32xf32>
    %16 = tpu.matmul %14, %15, %cst_11 {dimension_numbers = #tpu.dot_dimension_numbers<[1], [0], [0], [1], [0, 0, 1, 1], [], []>} : vector<8x4xf32>, vector<4x32xf32>, vector<8x32xf32> -> vector<8x32xf32>
    %c0_12 = arith.constant 0 : index
    %c0_13 = arith.constant 0 : index
    %17 = vector.load %arg5[%c0_12, %c0_13] : memref<1x32xf32, #tpu.memory_space<vmem>>, vector<1x32xf32>
    %18 = vector.broadcast %17 : vector<1x32xf32> to vector<8x32xf32>
    %19 = arith.addf %16, %18 : vector<8x32xf32>
    %20 = arith.negf %19 : vector<8x32xf32>
    %21 = math.exp %20 : vector<8x32xf32>
    %cst_14 = arith.constant 1.000000e+00 : f32
    %22 = vector.broadcast %cst_14 : f32 to vector<8x32xf32>
    %23 = arith.addf %22, %21 : vector<8x32xf32>
    %24 = arith.divf %22, %23 : vector<8x32xf32>
    %25 = vector.shape_cast %24 : vector<8x32xf32> to vector<8x32x1xf32>
    %26 = vector.broadcast %25 : vector<8x32x1xf32> to vector<8x32x256xf32>
    %27 = arith.mulf %0, %26 : vector<8x32x256xf32>
    %c0_15 = arith.constant 0 : index
    %c0_16 = arith.constant 0 : index
    %c0_17 = arith.constant 0 : index
    %28 = vector.load %arg6[%c0_15, %c0_16, %c0_17] : memref<8x32x256xf32, #tpu.memory_space<vmem>>, vector<8x32x256xf32>
    tpu.vector_store %arg6[%c0_15, %c0_16, %c0_17], %27 {strides = array<i32>} : memref<8x32x256xf32, #tpu.memory_space<vmem>>, vector<8x32x256xf32>,
    return
  }
  func.func @transform_0(%arg0: i32) -> (i32, i32, i32) {
    %c0_i32 = arith.constant 0 : i32
    %c0_i32_0 = arith.constant 0 : i32
    %c0_i32_1 = arith.constant 0 : i32
    return %arg0, %c0_i32, %c0_i32_0 : i32, i32, i32
  }
  func.func @transform_1(%arg0: i32) -> (i32, i32) {
    %c0_i32 = arith.constant 0 : i32
    %c0_i32_0 = arith.constant 0 : i32
    %c0_i32_1 = arith.constant 0 : i32
    return %c0_i32, %c0_i32_0 : i32, i32
  }
  func.func @transform_2(%arg0: i32) -> (i32, i32) {
    %c0_i32 = arith.constant 0 : i32
    %c0_i32_0 = arith.constant 0 : i32
    %c0_i32_1 = arith.constant 0 : i32
    return %c0_i32, %c0_i32_0 : i32, i32
  }
  func.func @transform_3(%arg0: i32) -> (i32, i32) {
    %c0_i32 = arith.constant 0 : i32
    %c0_i32_0 = arith.constant 0 : i32
    %c0_i32_1 = arith.constant 0 : i32
    return %c0_i32, %c0_i32_0 : i32, i32
  }
  func.func @transform_4(%arg0: i32) -> (i32, i32) {
    %c0_i32 = arith.constant 0 : i32
    %c0_i32_0 = arith.constant 0 : i32
    %c0_i32_1 = arith.constant 0 : i32
    return %c0_i32, %c0_i32_0 : i32, i32
  }
  func.func @transform_5(%arg0: i32) -> (i32, i32, i32) {
    %c0_i32 = arith.constant 0 : i32
    %c0_i32_0 = arith.constant 0 : i32
    %c0_i32_1 = arith.constant 0 : i32
    return %arg0, %c0_i32, %c0_i32_0 : i32, i32, i32
  }
}

</mosaic_0001>

<llo_original>
// kernel: tpu_custom_call.1
$region0: #{tpu_custom_call.1}
  #allocation0 [shape = 'u32[]', space=smem, size = 0x4, offset = 0x4, fixed_abs, tag = 'smem constant byte address 0x4 - core index']
  #allocation1 [shape = 'u32[144,128]{1,0:T(1,128)}', space=vmem, size = 0x12000, scoped, tag = 'internal scratch']
  %s0 = inlined_call_operand.hbm [shape: f32[16,32,256], index: 0, kind: input, shape index: {}]
  %s1 = inlined_call_operand.vmem [shape: f32[32,4], index: 1, kind: input, shape index: {}]
  %s2 = inlined_call_operand.vmem [shape: f32[1,4], index: 2, kind: input, shape index: {}]
  %s3 = inlined_call_operand.vmem [shape: f32[4,32], index: 3, kind: input, shape index: {}]
  %s4 = inlined_call_operand.vmem [shape: f32[1,32], index: 4, kind: input, shape index: {}]
  %s5 = inlined_call_operand.hbm [shape: f32[16,32,256], index: 5, kind: output, shape index: {}]
  %s6 = sld [smem:[#allocation0]]
  $region57: #{tpu_custom_call.1} parent=0
    _
  %s8 = ssub.s32 1, %s6
  %s9 = scalar_select 0, %s8, %s6
  $region1: #{tpu_custom_call.1} parent=0
    #allocation2 [shape = 'u8[524288]{0}', space=vmem, size = 0x80000, scoped, tag = 'input window, operand 0']
    #allocation3 [shape = 's32[2]{0}', space=sflag, size = 0x8, scoped, tag = 'scoped memory for tpu_custom_call.1']
    #allocation4 [shape = 's32[2]{0}', space=sflag, size = 0x8, scoped, tag = 'scoped memory for tpu_custom_call.1']
    #allocation5 [shape = 'u8[524288]{0}', space=vmem, size = 0x80000, scoped, tag = 'output window, operand 0']
    %10 = vsyncpa [#allocation3], 0
    %s11 = scalar_lea.sflag [#allocation3], 1
    %12 = vsyncpa %s11, 0
    %13 = vsyncpa [#allocation4], 0
    %s14 = scalar_lea.sflag [#allocation4], 1
    %15 = vsyncpa %s14, 0
    loop: start=0, step=1, limit=4
    $region2: #{tpu_custom_call.1} parent=1 // loop_pre_header
      _
    $region3: #{tpu_custom_call.1} parent=1 // loop_header
      %s17 = sphi 0, %s21
      %p18 = scmp.ge.s32.totalorder %s17, 4
      %s27 = sphi 0, %s29
      %s30 = sphi 0, %s27
      %s31 = sphi 0, %s30
      %s47 = sphi 0, %s31
      %s51 = sphi 0, %s51
      %s53 = sphi 0, %s51
      %s54 = sphi 0, %s53
      %s68 = sphi 0, %s54
      %s72 = sphi 0, %s72
      %s74 = sphi 0, %s72
      %s75 = sphi 0, %s74
      %s89 = sphi 0, %s75
      %s93 = sphi 0, %s93
      %s95 = sphi 0, %s93
      %s96 = sphi 0, %s95
      %s110 = sphi 0, %s96
      %s114 = sphi 0, %s114
      %s116 = sphi 0, %s114
      %s117 = sphi 0, %s116
      %s131 = sphi 0, %s117
      %s137 = sphi 0, %s139
      %s140 = sphi 0, %s137
      %s141 = sphi 0, %s140
      %s157 = sphi 0, %s141
    $region4: #{tpu_custom_call.1} parent=1 // loop_header_branch
      %20 = sbr.rel (%p18) target = $region8
    $region5: #{tpu_custom_call.1} parent=1 // loop_body
      %s22 = ssub.s32 %s17, 1
      %s23 = ssub.s32 %s17, 2
      %s24 = sadd.s32 %s17, 1
      %s25 = ssub.s32 %s17, %s24
      %p26 = scmp.eq.s32.totalorder %s25, 0
      %s28 = sadd.s32 %s27, 1
      %s29 = scalar_select %p26, %s27, %s28
      %p32 = pneg %p26
      %p33 = scmp.eq.s32.totalorder %s17, 1
      %p34 = por %p32, %p33
      %p35 = scmp.ne.s32.totalorder %s27, %s30
      %p36 = scmp.eq.s32.totalorder %s17, 0
      %p37 = por %p35, %p36
      %p38 = scmp.ne.s32.totalorder %s27, %s30
      %p39 = scmp.eq.s32.totalorder %s22, 1
      %p40 = por %p38, %p39
      %p41 = scmp.ne.s32.totalorder %s30, %s31
      %p42 = scmp.eq.s32.totalorder %s22, 0
      %p43 = por %p41, %p42
      %p44 = scmp.ne.s32.totalorder %s30, %s31
      %p45 = scmp.eq.s32.totalorder %s23, 1
      %p46 = por %p44, %p45
      %p48 = scmp.ne.s32.totalorder %s31, %s47
      %p49 = scmp.eq.s32.totalorder %s23, 0
      %p50 = por %p48, %p49
      %s52 = sadd.s32 %s51, 1
      %p55 = scmp.eq.s32.totalorder %s17, 1
      %p56 = scmp.ne.s32.totalorder %s51, %s53
      %p57 = scmp.eq.s32.totalorder %s17, 0
      %p58 = por %p56, %p57
      %p59 = scmp.ne.s32.totalorder %s51, %s53
      %p60 = scmp.eq.s32.totalorder %s22, 1
      %p61 = por %p59, %p60
      %p62 = scmp.ne.s32.totalorder %s53, %s54
      %p63 = scmp.eq.s32.totalorder %s22, 0
      %p64 = por %p62, %p63
      %p65 = scmp.ne.s32.totalorder %s53, %s54
      %p66 = scmp.eq.s32.totalorder %s23, 1
      %p67 = por %p65, %p66
      %p69 = scmp.ne.s32.totalorder %s54, %s68
      %p70 = scmp.eq.s32.totalorder %s23, 0
      %p71 = por %p69, %p70
      %s73 = sadd.s32 %s72, 1
      %p76 = scmp.eq.s32.totalorder %s17, 1
      %p77 = scmp.ne.s32.totalorder %s72, %s74
      %p78 = scmp.eq.s32.totalorder %s17, 0
      %p79 = por %p77, %p78
      %p80 = scmp.ne.s32.totalorder %s72, %s74
      %p81 = scmp.eq.s32.totalorder %s22, 1
      %p82 = por %p80, %p81
      %p83 = scmp.ne.s32.totalorder %s74, %s75
      %p84 = scmp.eq.s32.totalorder %s22, 0
      %p85 = por %p83, %p84
      %p86 = scmp.ne.s32.totalorder %s74, %s75
      %p87 = scmp.eq.s32.totalorder %s23, 1
      %p88 = por %p86, %p87
      %p90 = scmp.ne.s32.totalorder %s75, %s89
      %p91 = scmp.eq.s32.totalorder %s23, 0
      %p92 = por %p90, %p91
      %s94 = sadd.s32 %s93, 1
      %p97 = scmp.eq.s32.totalorder %s17, 1
      %p98 = scmp.ne.s32.totalorder %s93, %s95
      %p99 = scmp.eq.s32.totalorder %s17, 0
      %p100 = por %p98, %p99
      %p101 = scmp.ne.s32.totalorder %s93, %s95
      %p102 = scmp.eq.s32.totalorder %s22, 1
      %p103 = por %p101, %p102
      %p104 = scmp.ne.s32.totalorder %s95, %s96
      %p105 = scmp.eq.s32.totalorder %s22, 0
      %p106 = por %p104, %p105
      %p107 = scmp.ne.s32.totalorder %s95, %s96
      %p108 = scmp.eq.s32.totalorder %s23, 1
      %p109 = por %p107, %p108
      %p111 = scmp.ne.s32.totalorder %s96, %s110
      %p112 = scmp.eq.s32.totalorder %s23, 0
      %p113 = por %p111, %p112
      %s115 = sadd.s32 %s114, 1
      %p118 = scmp.eq.s32.totalorder %s17, 1
      %p119 = scmp.ne.s32.totalorder %s114, %s116
      %p120 = scmp.eq.s32.totalorder %s17, 0
      %p121 = por %p119, %p120
      %p122 = scmp.ne.s32.totalorder %s114, %s116
      %p123 = scmp.eq.s32.totalorder %s22, 1
      %p124 = por %p122, %p123
      %p125 = scmp.ne.s32.totalorder %s116, %s117
      %p126 = scmp.eq.s32.totalorder %s22, 0
      %p127 = por %p125, %p126
      %p128 = scmp.ne.s32.totalorder %s116, %s117
      %p129 = scmp.eq.s32.totalorder %s23, 1
      %p130 = por %p128, %p129
      %p132 = scmp.ne.s32.totalorder %s117, %s131
      %p133 = scmp.eq.s32.totalorder %s23, 0
      %p134 = por %p132, %p133
      %s135 = ssub.s32 %s17, %s24
      %p136 = scmp.eq.s32.totalorder %s135, 0
      %s138 = sadd.s32 %s137, 1
      %s139 = scalar_select %p136, %s137, %s138
      %p142 = pneg %p136
      %p143 = scmp.eq.s32.totalorder %s17, 1
      %p144 = por %p142, %p143
      %p145 = scmp.ne.s32.totalorder %s137, %s140
      %p146 = scmp.eq.s32.totalorder %s17, 0
      %p147 = por %p145, %p146
      %p148 = scmp.ne.s32.totalorder %s137, %s140
      %p149 = scmp.eq.s32.totalorder %s22, 1
      %p150 = por %p148, %p149
      %p151 = scmp.ne.s32.totalorder %s140, %s141
      %p152 = scmp.eq.s32.totalorder %s22, 0
      %p153 = por %p151, %p152
      %p154 = scmp.ne.s32.totalorder %s140, %s141
      %p155 = scmp.eq.s32.totalorder %s23, 1
      %p156 = por %p154, %p155
      %p158 = scmp.ne.s32.totalorder %s141, %s157
      %p159 = scmp.eq.s32.totalorder %s23, 0
      %p160 = por %p158, %p159
      %p161 = scmp.le.s32.totalorder 1, %s17
      %p162 = scmp.lt.s32.totalorder %s17, 3
      %p163 = pnand %p161, %p162
      %p164 = pneg %p163
      // Predicated region
      $region9: #{tpu_custom_call.1} parent=5 // pred_check
        _
      $region10: #{tpu_custom_call.1} parent=5 // pred_check_branch
        %166 = sbr.rel (%p163) target = $region12
      $region11: #{tpu_custom_call.1} parent=5 // pred_region
        %s167 = ssub.s32 %s17, 1
        // Predicated region
        $region13: #{tpu_custom_call.1} parent=11 // pred_check
          %p168 = pneg %p64
        $region14: #{tpu_custom_call.1} parent=11 // pred_check_branch
          %170 = sbr.rel (%p168) target = $region16
        $region15: #{tpu_custom_call.1} parent=11 // pred_region
          _
        $region16: #{tpu_custom_call.1} parent=11 // pred_fallthru
          _
        // Predicated region
        $region17: #{tpu_custom_call.1} parent=11 // pred_check
          %p171 = pneg %p85
        $region18: #{tpu_custom_call.1} parent=11 // pred_check_branch
          %173 = sbr.rel (%p171) target = $region20
        $region19: #{tpu_custom_call.1} parent=11 // pred_region
          _
        $region20: #{tpu_custom_call.1} parent=11 // pred_fallthru
          _
        // Predicated region
        $region21: #{tpu_custom_call.1} parent=11 // pred_check
          %p174 = pneg %p106
        $region22: #{tpu_custom_call.1} parent=11 // pred_check_branch
          %176 = sbr.rel (%p174) target = $region24
        $region23: #{tpu_custom_call.1} parent=11 // pred_region
          _
        $region24: #{tpu_custom_call.1} parent=11 // pred_fallthru
          _
        // Predicated region
        $region25: #{tpu_custom_call.1} parent=11 // pred_check
          %p177 = pneg %p127
        $region26: #{tpu_custom_call.1} parent=11 // pred_check_branch
          %179 = sbr.rel (%p177) target = $region28
        $region27: #{tpu_custom_call.1} parent=11 // pred_region
          _
        $region28: #{tpu_custom_call.1} parent=11 // pred_fallthru
          _
      $region12: #{tpu_custom_call.1} parent=5 // pred_fallthru
        _
      %p180 = scmp.lt.s32.totalorder %s17, 2
      // Predicated region
      $region29: #{tpu_custom_call.1} parent=5 // pred_check
        %p181 = pneg %p180
      $region30: #{tpu_custom_call.1} parent=5 // pred_check_branch
        %183 = sbr.rel (%p181) target = $region32
      $region31: #{tpu_custom_call.1} parent=5 // pred_region
        // Predicated region
        $region33: #{tpu_custom_call.1} parent=31 // pred_check
          %p184 = pneg %p37
        $region34: #{tpu_custom_call.1} parent=31 // pred_check_branch
          %186 = sbr.rel (%p184) target = $region36
        $region35: #{tpu_custom_call.1} parent=31 // pred_region
          %s187 = sand.u32 %s27, 1
          %s188 = scalar_lea.sflag [#allocation3], %s187
          %s189 = sand.u32 %s27, 1
          %s190 = smul.addr %s189, 512
          %s191 = scalar_lea.vmem [#allocation2], %s190
          %s192 = smul.u32 8, %s17
          %s194 = ssub.s32 8192, 8192
          %195 = vsyncadd %s188, %s194
          %s196 = smul.addr %s192, 8
          %s197 = smul.addr %s196, 128
          %s198 = scalar_lea.hbm %s0, %s197
          %s199 = sshll.u32 %s191, 4
          %s200 = int_to_ptr.vmem [resolvable:$true] %s199
          %205 = dma.hbm_to_vmem [thread:$0]  %s198, 8192, %s200, %s188, 256, 256, 16
        $region36: #{tpu_custom_call.1} parent=31 // pred_fallthru
          _
      $region32: #{tpu_custom_call.1} parent=5 // pred_fallthru
        _
      %p206 = scmp.le.s32.totalorder 1, %s17
      %p207 = scmp.lt.s32.totalorder %s17, 3
      %p208 = pnand %p206, %p207
      %p209 = pneg %p208
      // Predicated region
      $region37: #{tpu_custom_call.1} parent=5 // pred_check
        _
      $region38: #{tpu_custom_call.1} parent=5 // pred_check_branch
        %211 = sbr.rel (%p208) target = $region40
      $region39: #{tpu_custom_call.1} parent=5 // pred_region
        %s212 = ssub.s32 %s17, 1
        %s213 = sand.u32 %s30, 1
        %s214 = scalar_lea.sflag [#allocation3], %s213
        %s215 = sand.u32 %s30, 1
        %s216 = smul.addr %s215, 512
        %s217 = scalar_lea.vmem [#allocation2], %s216
        // Predicated region
        $region41: #{tpu_custom_call.1} parent=39 // pred_check
          %p218 = pneg %p43
        $region42: #{tpu_custom_call.1} parent=39 // pred_check_branch
          %220 = sbr.rel (%p218) target = $region44
        $region43: #{tpu_custom_call.1} parent=39 // pred_region
          %221 = dma.done %s214, 8192
        $region44: #{tpu_custom_call.1} parent=39 // pred_fallthru
          _
        %s222 = sand.u32 %s30, 1
        %s223 = scalar_lea.sflag [#allocation3], %s222
        %s224 = sand.u32 %s30, 1
        %s225 = smul.addr %s224, 512
        %s226 = scalar_lea.vmem [#allocation2], %s225
        %p227 = pneg %p43
        %p228 = pneg %p40
        %p229 = pneg %p64
        %p230 = pneg %p61
        %p231 = pneg %p85
        %p232 = pneg %p82
        %p233 = pneg %p106
        %p234 = pneg %p103
        %p235 = pneg %p127
        %p236 = pneg %p124
        %p237 = pneg %p153
        %p238 = pneg %p150
        %s239 = sand.u32 %s140, 1
        %s240 = scalar_lea.sflag [#allocation4], %s239
        %s241 = sand.u32 %s140, 1
        %s242 = smul.addr %s241, 512
        %s243 = scalar_lea.vmem [#allocation5], %s242
        %s244 = smul.u32 8, %s22
        %s245 = smul.u32 8, %s22
        %v246 = vld [vmem:[%s217] sm:$0xff]
        %v247 = vld [vmem:[%s217 + $0x8] sm:$0xff]
        %v248 = vld [vmem:[%s217 + $0x10] sm:$0xff]
        %v249 = vld [vmem:[%s217 + $0x18] sm:$0xff]
        %v250 = vld [vmem:[%s217 + $0x20] sm:$0xff]
        %v251 = vld [vmem:[%s217 + $0x28] sm:$0xff]
        %v252 = vld [vmem:[%s217 + $0x30] sm:$0xff]
        %v253 = vld [vmem:[%s217 + $0x38] sm:$0xff]
        %v254 = vld [vmem:[%s217 + $0x40] sm:$0xff]
        %v255 = vld [vmem:[%s217 + $0x48] sm:$0xff]
        %v256 = vld [vmem:[%s217 + $0x50] sm:$0xff]
        %v257 = vld [vmem:[%s217 + $0x58] sm:$0xff]
        %v258 = vld [vmem:[%s217 + $0x60] sm:$0xff]
        %v259 = vld [vmem:[%s217 + $0x68] sm:$0xff]
        %v260 = vld [vmem:[%s217 + $0x70] sm:$0xff]
        %v261 = vld [vmem:[%s217 + $0x78] sm:$0xff]
        %v262 = vld [vmem:[%s217 + $0x80] sm:$0xff]
        %v263 = vld [vmem:[%s217 + $0x88] sm:$0xff]
        %v264 = vld [vmem:[%s217 + $0x90] sm:$0xff]
        %v265 = vld [vmem:[%s217 + $0x98] sm:$0xff]
        %v266 = vld [vmem:[%s217 + $0xa0] sm:$0xff]
        %v267 = vld [vmem:[%s217 + $0xa8] sm:$0xff]
        %v268 = vld [vmem:[%s217 + $0xb0] sm:$0xff]
        %v269 = vld [vmem:[%s217 + $0xb8] sm:$0xff]
        %v270 = vld [vmem:[%s217 + $0xc0] sm:$0xff]
        %v271 = vld [vmem:[%s217 + $0xc8] sm:$0xff]
        %v272 = vld [vmem:[%s217 + $0xd0] sm:$0xff]
        %v273 = vld [vmem:[%s217 + $0xd8] sm:$0xff]
        %v274 = vld [vmem:[%s217 + $0xe0] sm:$0xff]
        %v275 = vld [vmem:[%s217 + $0xe8] sm:$0xff]
        %v276 = vld [vmem:[%s217 + $0xf0] sm:$0xff]
        %v277 = vld [vmem:[%s217 + $0xf8] sm:$0xff]
        %v278 = vld [vmem:[%s217 + $0x100] sm:$0xff]
        %v279 = vld [vmem:[%s217 + $0x108] sm:$0xff]
        %v280 = vld [vmem:[%s217 + $0x110] sm:$0xff]
        %v281 = vld [vmem:[%s217 + $0x118] sm:$0xff]
        %v282 = vld [vmem:[%s217 + $0x120] sm:$0xff]
        %v283 = vld [vmem:[%s217 + $0x128] sm:$0xff]
        %v284 = vld [vmem:[%s217 + $0x130] sm:$0xff]
        %v285 = vld [vmem:[%s217 + $0x138] sm:$0xff]
        %v286 = vld [vmem:[%s217 + $0x140] sm:$0xff]
        %v287 = vld [vmem:[%s217 + $0x148] sm:$0xff]
        %v288 = vld [vmem:[%s217 + $0x150] sm:$0xff]
        %v289 = vld [vmem:[%s217 + $0x158] sm:$0xff]
        %v290 = vld [vmem:[%s217 + $0x160] sm:$0xff]
        %v291 = vld [vmem:[%s217 + $0x168] sm:$0xff]
        %v292 = vld [vmem:[%s217 + $0x170] sm:$0xff]
        %v293 = vld [vmem:[%s217 + $0x178] sm:$0xff]
        %v294 = vld [vmem:[%s217 + $0x180] sm:$0xff]
        %v295 = vld [vmem:[%s217 + $0x188] sm:$0xff]
        %v296 = vld [vmem:[%s217 + $0x190] sm:$0xff]
        %v297 = vld [vmem:[%s217 + $0x198] sm:$0xff]
        %v298 = vld [vmem:[%s217 + $0x1a0] sm:$0xff]
        %v299 = vld [vmem:[%s217 + $0x1a8] sm:$0xff]
        %v300 = vld [vmem:[%s217 + $0x1b0] sm:$0xff]
        %v301 = vld [vmem:[%s217 + $0x1b8] sm:$0xff]
        %v302 = vld [vmem:[%s217 + $0x1c0] sm:$0xff]
        %v303 = vld [vmem:[%s217 + $0x1c8] sm:$0xff]
        %v304 = vld [vmem:[%s217 + $0x1d0] sm:$0xff]
        %v305 = vld [vmem:[%s217 + $0x1d8] sm:$0xff]
        %v306 = vld [vmem:[%s217 + $0x1e0] sm:$0xff]
        %v307 = vld [vmem:[%s217 + $0x1e8] sm:$0xff]
        %v308 = vld [vmem:[%s217 + $0x1f0] sm:$0xff]
        %v309 = vld [vmem:[%s217 + $0x1f8] sm:$0xff]
        %v310 = vadd.f32 %v246, %v247
        %311 = vadd.xlane.f32.xlu0 %v310
        %v312 = vpop.xlane.xlu0 %311
        %v313 = vadd.f32 %v248, %v249
        %314 = vadd.xlane.f32.xlu0 %v313
        %v315 = vpop.xlane.xlu0 %314
        %v316 = vadd.f32 %v250, %v251
        %317 = vadd.xlane.f32.xlu0 %v316
        %v318 = vpop.xlane.xlu0 %317
        %v319 = vadd.f32 %v252, %v253
        %320 = vadd.xlane.f32.xlu0 %v319
        %v321 = vpop.xlane.xlu0 %320
        %v322 = vadd.f32 %v254, %v255
        %323 = vadd.xlane.f32.xlu0 %v322
        %v324 = vpop.xlane.xlu0 %323
        %v325 = vadd.f32 %v256, %v257
        %326 = vadd.xlane.f32.xlu0 %v325
        %v327 = vpop.xlane.xlu0 %326
        %v328 = vadd.f32 %v258, %v259
        %329 = vadd.xlane.f32.xlu0 %v328
        %v330 = vpop.xlane.xlu0 %329
        %v331 = vadd.f32 %v260, %v261
        %332 = vadd.xlane.f32.xlu0 %v331
        %v333 = vpop.xlane.xlu0 %332
        %v334 = vadd.f32 %v262, %v263
        %335 = vadd.xlane.f32.xlu0 %v334
        %v336 = vpop.xlane.xlu0 %335
        %v337 = vadd.f32 %v264, %v265
        %338 = vadd.xlane.f32.xlu0 %v337
        %v339 = vpop.xlane.xlu0 %338
        %v340 = vadd.f32 %v266, %v267
        %341 = vadd.xlane.f32.xlu0 %v340
        %v342 = vpop.xlane.xlu0 %341
        %v343 = vadd.f32 %v268, %v269
        %344 = vadd.xlane.f32.xlu0 %v343
        %v345 = vpop.xlane.xlu0 %344
        %v346 = vadd.f32 %v270, %v271
        %347 = vadd.xlane.f32.xlu0 %v346
        %v348 = vpop.xlane.xlu0 %347
        %v349 = vadd.f32 %v272, %v273
        %350 = vadd.xlane.f32.xlu0 %v349
        %v351 = vpop.xlane.xlu0 %350
        %v352 = vadd.f32 %v274, %v275
        %353 = vadd.xlane.f32.xlu0 %v352
        %v354 = vpop.xlane.xlu0 %353
        %v355 = vadd.f32 %v276, %v277
        %356 = vadd.xlane.f32.xlu0 %v355
        %v357 = vpop.xlane.xlu0 %356
        %v358 = vadd.f32 %v278, %v279
        %359 = vadd.xlane.f32.xlu0 %v358
        %v360 = vpop.xlane.xlu0 %359
        %v361 = vadd.f32 %v280, %v281
        %362 = vadd.xlane.f32.xlu0 %v361
        %v363 = vpop.xlane.xlu0 %362
        %v364 = vadd.f32 %v282, %v283
        %365 = vadd.xlane.f32.xlu0 %v364
        %v366 = vpop.xlane.xlu0 %365
        %v367 = vadd.f32 %v284, %v285
        %368 = vadd.xlane.f32.xlu0 %v367
        %v369 = vpop.xlane.xlu0 %368
        %v370 = vadd.f32 %v286, %v287
        %371 = vadd.xlane.f32.xlu0 %v370
        %v372 = vpop.xlane.xlu0 %371
        %v373 = vadd.f32 %v288, %v289
        %374 = vadd.xlane.f32.xlu0 %v373
        %v375 = vpop.xlane.xlu0 %374
        %v376 = vadd.f32 %v290, %v291
        %377 = vadd.xlane.f32.xlu0 %v376
        %v378 = vpop.xlane.xlu0 %377
        %v379 = vadd.f32 %v292, %v293
        %380 = vadd.xlane.f32.xlu0 %v379
        %v381 = vpop.xlane.xlu0 %380
        %v382 = vadd.f32 %v294, %v295
        %383 = vadd.xlane.f32.xlu0 %v382
        %v384 = vpop.xlane.xlu0 %383
        %v385 = vadd.f32 %v296, %v297
        %386 = vadd.xlane.f32.xlu0 %v385
        %v387 = vpop.xlane.xlu0 %386
        %v388 = vadd.f32 %v298, %v299
        %389 = vadd.xlane.f32.xlu0 %v388
        %v390 = vpop.xlane.xlu0 %389
        %v391 = vadd.f32 %v300, %v301
        %392 = vadd.xlane.f32.xlu0 %v391
        %v393 = vpop.xlane.xlu0 %392
        %v394 = vadd.f32 %v302, %v303
        %395 = vadd.xlane.f32.xlu0 %v394
        %v396 = vpop.xlane.xlu0 %395
        %v397 = vadd.f32 %v304, %v305
        %398 = vadd.xlane.f32.xlu0 %v397
        %v399 = vpop.xlane.xlu0 %398
        %v400 = vadd.f32 %v306, %v307
        %401 = vadd.xlane.f32.xlu0 %v400
        %v402 = vpop.xlane.xlu0 %401
        %v403 = vadd.f32 %v308, %v309
        %404 = vadd.xlane.f32.xlu0 %v403
        %v405 = vpop.xlane.xlu0 %404
        %v406 = vmul.f32 %v312, 0.00390625
        %v407 = vmul.f32 %v315, 0.00390625
        %v408 = vmul.f32 %v318, 0.00390625
        %v409 = vmul.f32 %v321, 0.00390625
        %v410 = vmul.f32 %v324, 0.00390625
        %v411 = vmul.f32 %v327, 0.00390625
        %v412 = vmul.f32 %v330, 0.00390625
        %v413 = vmul.f32 %v333, 0.00390625
        %v414 = vmul.f32 %v336, 0.00390625
        %v415 = vmul.f32 %v339, 0.00390625
        %v416 = vmul.f32 %v342, 0.00390625
        %v417 = vmul.f32 %v345, 0.00390625
        %v418 = vmul.f32 %v348, 0.00390625
        %v419 = vmul.f32 %v351, 0.00390625
        %v420 = vmul.f32 %v354, 0.00390625
        %v421 = vmul.f32 %v357, 0.00390625
        %v422 = vmul.f32 %v360, 0.00390625
        %v423 = vmul.f32 %v363, 0.00390625
        %v424 = vmul.f32 %v366, 0.00390625
        %v425 = vmul.f32 %v369, 0.00390625
        %v426 = vmul.f32 %v372, 0.00390625
        %v427 = vmul.f32 %v375, 0.00390625
        %v428 = vmul.f32 %v378, 0.00390625
        %v429 = vmul.f32 %v381, 0.00390625
        %v430 = vmul.f32 %v384, 0.00390625
        %v431 = vmul.f32 %v387, 0.00390625
        %v432 = vmul.f32 %v390, 0.00390625
        %v433 = vmul.f32 %v393, 0.00390625
        %v434 = vmul.f32 %v396, 0.00390625
        %v435 = vmul.f32 %v399, 0.00390625
        %v436 = vmul.f32 %v402, 0.00390625
        %v437 = vmul.f32 %v405, 0.00390625
        %v438 = vld [vmem:[%s1] sm:$0xff]
        %v439 = vld [vmem:[%s1 + $0x8] sm:$0xff]
        %v440 = vld [vmem:[%s1 + $0x10] sm:$0xff]
        %v441 = vld [vmem:[%s1 + $0x18] sm:$0xff]
        %v442 = vld [vmem:[%s2] sm:$0x1]
        %v444 = vlaneseq
        %v445 = vshrl.u32 %v444, 7
        %v446 = vsub.s32 0, %v445
        %v447 = vrot.slane %v442, %v446
        %v481 = vlaneseq
        %v482 = vand.u32 %v481, 127
        %v483 = vlaneseq
        %v484 = vshrl.u32 %v483, 7
        %v485 = vsub.s32 %v482, %v484
        %v486 = vrot.slane %v406, %v485
        %v487 = vadd.s32 %v482, 4294967288
        %v488 = vlaneseq
        %v489 = vshrl.u32 %v488, 7
        %v490 = vsub.s32 %v487, %v489
        %v491 = vrot.slane %v407, %v490
        %vm492 = vcmask 130112
        %v493 = vsel %vm492, %v491, %v486
        %v494 = vadd.s32 %v482, 4294967280
        %v495 = vlaneseq
        %v496 = vshrl.u32 %v495, 7
        %v497 = vsub.s32 %v494, %v496
        %v498 = vrot.slane %v408, %v497
        %vm499 = vcmask 195712
        %v500 = vsel %vm499, %v498, %v493
        %v501 = vadd.s32 %v482, 4294967272
        %v502 = vlaneseq
        %v503 = vshrl.u32 %v502, 7
        %v504 = vsub.s32 %v501, %v503
        %v505 = vrot.slane %v409, %v504
        %vm506 = vcmask 261312
        %v507 = vsel %vm506, %v505, %v500
        %v508 = vlaneseq
        %v509 = vshrl.u32 %v508, 7
        %v510 = vsub.s32 %v482, %v509
        %v511 = vrot.slane %v410, %v510
        %v512 = vlaneseq
        %v513 = vshrl.u32 %v512, 7
        %v514 = vsub.s32 %v487, %v513
        %v515 = vrot.slane %v411, %v514
        %v516 = vsel %vm492, %v515, %v511
        %v517 = vlaneseq
        %v518 = vshrl.u32 %v517, 7
        %v519 = vsub.s32 %v494, %v518
        %v520 = vrot.slane %v412, %v519
        %v521 = vsel %vm499, %v520, %v516
        %v522 = vlaneseq
        %v523 = vshrl.u32 %v522, 7
        %v524 = vsub.s32 %v501, %v523
        %v525 = vrot.slane %v413, %v524
        %v526 = vsel %vm506, %v525, %v521
        %v527 = vlaneseq
        %v528 = vshrl.u32 %v527, 7
        %v529 = vsub.s32 %v482, %v528
        %v530 = vrot.slane %v414, %v529
        %v531 = vlaneseq
        %v532 = vshrl.u32 %v531, 7
        %v533 = vsub.s32 %v487, %v532
        %v534 = vrot.slane %v415, %v533
        %v535 = vsel %vm492, %v534, %v530
        %v536 = vlaneseq
        %v537 = vshrl.u32 %v536, 7
        %v538 = vsub.s32 %v494, %v537
        %v539 = vrot.slane %v416, %v538
        %v540 = vsel %vm499, %v539, %v535
        %v541 = vlaneseq
        %v542 = vshrl.u32 %v541, 7
        %v543 = vsub.s32 %v501, %v542
        %v544 = vrot.slane %v417, %v543
        %v545 = vsel %vm506, %v544, %v540
        %v546 = vlaneseq
        %v547 = vshrl.u32 %v546, 7
        %v548 = vsub.s32 %v482, %v547
        %v549 = vrot.slane %v418, %v548
        %v550 = vlaneseq
        %v551 = vshrl.u32 %v550, 7
        %v552 = vsub.s32 %v487, %v551
        %v553 = vrot.slane %v419, %v552
        %v554 = vsel %vm492, %v553, %v549
        %v555 = vlaneseq
        %v556 = vshrl.u32 %v555, 7
        %v557 = vsub.s32 %v494, %v556
        %v558 = vrot.slane %v420, %v557
        %v559 = vsel %vm499, %v558, %v554
        %v560 = vlaneseq
        %v561 = vshrl.u32 %v560, 7
        %v562 = vsub.s32 %v501, %v561
        %v563 = vrot.slane %v421, %v562
        %v564 = vsel %vm506, %v563, %v559
        %v565 = vlaneseq
        %v566 = vshrl.u32 %v565, 7
        %v567 = vsub.s32 %v482, %v566
        %v568 = vrot.slane %v422, %v567
        %v569 = vlaneseq
        %v570 = vshrl.u32 %v569, 7
        %v571 = vsub.s32 %v487, %v570
        %v572 = vrot.slane %v423, %v571
        %v573 = vsel %vm492, %v572, %v568
        %v574 = vlaneseq
        %v575 = vshrl.u32 %v574, 7
        %v576 = vsub.s32 %v494, %v575
        %v577 = vrot.slane %v424, %v576
        %v578 = vsel %vm499, %v577, %v573
        %v579 = vlaneseq
        %v580 = vshrl.u32 %v579, 7
        %v581 = vsub.s32 %v501, %v580
        %v582 = vrot.slane %v425, %v581
        %v583 = vsel %vm506, %v582, %v578
        %v584 = vlaneseq
        %v585 = vshrl.u32 %v584, 7
        %v586 = vsub.s32 %v482, %v585
        %v587 = vrot.slane %v426, %v586
        %v588 = vlaneseq
        %v589 = vshrl.u32 %v588, 7
        %v590 = vsub.s32 %v487, %v589
        %v591 = vrot.slane %v427, %v590
        %v592 = vsel %vm492, %v591, %v587
        %v593 = vlaneseq
        %v594 = vshrl.u32 %v593, 7
        %v595 = vsub.s32 %v494, %v594
        %v596 = vrot.slane %v428, %v595
        %v597 = vsel %vm499, %v596, %v592
        %v598 = vlaneseq
        %v599 = vshrl.u32 %v598, 7
        %v600 = vsub.s32 %v501, %v599
        %v601 = vrot.slane %v429, %v600
        %v602 = vsel %vm506, %v601, %v597
        %v603 = vlaneseq
        %v604 = vshrl.u32 %v603, 7
        %v605 = vsub.s32 %v482, %v604
        %v606 = vrot.slane %v430, %v605
        %v607 = vlaneseq
        %v608 = vshrl.u32 %v607, 7
        %v609 = vsub.s32 %v487, %v608
        %v610 = vrot.slane %v431, %v609
        %v611 = vsel %vm492, %v610, %v606
        %v612 = vlaneseq
        %v613 = vshrl.u32 %v612, 7
        %v614 = vsub.s32 %v494, %v613
        %v615 = vrot.slane %v432, %v614
        %v616 = vsel %vm499, %v615, %v611
        %v617 = vlaneseq
        %v618 = vshrl.u32 %v617, 7
        %v619 = vsub.s32 %v501, %v618
        %v620 = vrot.slane %v433, %v619
        %v621 = vsel %vm506, %v620, %v616
        %v622 = vlaneseq
        %v623 = vshrl.u32 %v622, 7
        %v624 = vsub.s32 %v482, %v623
        %v625 = vrot.slane %v434, %v624
        %v626 = vlaneseq
        %v627 = vshrl.u32 %v626, 7
        %v628 = vsub.s32 %v487, %v627
        %v629 = vrot.slane %v435, %v628
        %v630 = vsel %vm492, %v629, %v625
        %v631 = vlaneseq
        %v632 = vshrl.u32 %v631, 7
        %v633 = vsub.s32 %v494, %v632
        %v634 = vrot.slane %v436, %v633
        %v635 = vsel %vm499, %v634, %v630
        %v636 = vlaneseq
        %v637 = vshrl.u32 %v636, 7
        %v638 = vsub.s32 %v501, %v637
        %v639 = vrot.slane %v437, %v638
        %v640 = vsel %vm506, %v639, %v635
        %vm641 = vcmask 1041409
        %v642 = vsel %vm641, %v526, %v507
        %vm643 = vcmask 1042434
        %v644 = vsel %vm643, %v545, %v642
        %vm645 = vcmask 1043459
        %v646 = vsel %vm645, %v564, %v644
        %vm647 = vcmask 1044484
        %v648 = vsel %vm647, %v583, %v646
        %vm649 = vcmask 1045509
        %v650 = vsel %vm649, %v602, %v648
        %vm651 = vcmask 1046534
        %v652 = vsel %vm651, %v621, %v650
        %vm653 = vcmask 1047559
        %v654 = vsel %vm653, %v640, %v652
        %vm655 = vcmask 261120
        %v656 = vsel %vm655, %v654, 0
        %658 = vmatprep.subr.mxu0 0.0
        %659 = vmatpush1.msra.mxu0 0.0
        %660 = vmatprep.subr.mxu0 0.0
        %661 = vmatpush1.msra.mxu0 0.0
        %662 = vmatprep.subr.mxu0 0.0
        %663 = vmatpush1.msra.mxu0 0.0
        %664 = vmatprep.subr.mxu0 0.0
        %665 = vmatpush1.msra.mxu0 0.0
        %666 = vmatprep.subr.mxu0 0.0
        %667 = vmatpush1.msra.mxu0 0.0
        %668 = vmatprep.subr.mxu0 0.0
        %669 = vmatpush1.msra.mxu0 0.0
        %670 = vmatprep.subr.mxu0 0.0
        %671 = vmatpush1.msra.mxu0 0.0
        %672 = vmatprep.subr.mxu0 0.0
        %673 = vmatpush1.msra.mxu0 0.0
        %674 = vmatprep.subr.mxu0 0.0
        %675 = vmatpush1.msra.mxu0 0.0
        %676 = vmatprep.subr.mxu0 0.0
        %677 = vmatpush1.msra.mxu0 0.0
        %678 = vmatprep.subr.mxu0 0.0
        %679 = vmatpush1.msra.mxu0 0.0
        %680 = vmatprep.subr.mxu0 0.0
        %681 = vmatpush1.msra.mxu0 0.0
        %682 = vmatprep.subr.mxu0 0.0
        %683 = vmatpush1.msra.mxu0 %v441
        %684 = vmatprep.subr.mxu0 0.0
        %685 = vmatpush1.msra.mxu0 %v440
        %686 = vmatprep.subr.mxu0 0.0
        %687 = vmatpush1.msra.mxu0 %v439
        %688 = vmatprep.subr.mxu0 0.0
        %689 = vmatpush1.msra.mxu0 %v438
        %690 = vmatprep.subr.mxu0 0.0
        %691 = vmatpush2.msra.mxu0 0.0
        %692 = vmatprep.subr.mxu0 0.0
        %693 = vmatpush2.msra.mxu0 0.0
        %694 = vmatprep.subr.mxu0 0.0
        %695 = vmatpush2.msra.mxu0 0.0
        %696 = vmatprep.subr.mxu0 0.0
        %697 = vmatpush2.msra.mxu0 0.0
        %698 = vmatprep.subr.mxu0 0.0
        %699 = vmatpush2.msra.mxu0 0.0
        %700 = vmatprep.subr.mxu0 0.0
        %701 = vmatpush2.msra.mxu0 0.0
        %702 = vmatprep.subr.mxu0 0.0
        %703 = vmatpush2.msra.mxu0 0.0
        %704 = vmatprep.subr.mxu0 0.0
        %705 = vmatpush2.msra.mxu0 0.0
        %706 = vmatprep.subr.mxu0 0.0
        %707 = vmatpush2.msra.mxu0 0.0
        %708 = vmatprep.subr.mxu0 0.0
        %709 = vmatpush2.msra.mxu0 0.0
        %710 = vmatprep.subr.mxu0 0.0
        %711 = vmatpush2.msra.mxu0 0.0
        %712 = vmatprep.subr.mxu0 0.0
        %713 = vmatpush2.msra.mxu0 0.0
        %714 = vmatprep.subr.mxu0 0.0
        %715 = vmatpush2.msra.mxu0 0.0
        %716 = vmatprep.subr.mxu0 0.0
        %717 = vmatpush2.msra.mxu0 0.0
        %718 = vmatprep.subr.mxu0 0.0
        %719 = vmatpush2.msra.mxu0 0.0
        %720 = vmatprep.subr.mxu0 0.0
        %721 = vmatpush2.msra.mxu0 0.0
        %722 = vmatprep.mubr.f32.mxu0 0.0
        %723 = vmatmul.mubr.f32.gmra.mxu0 %v656
        %v724 = vpop.f32.mrf.mxu0
        %v725 = vadd.f32 %v447, %v724
        %v726 = vpop.f32.mrf.mxu0
        %727 = vdwg.mxu0
        %v728 = vxor.u32 %v725, 2147483648
        %v729 = vmul.f32 %v728, 1.442695
        %v730 = vpow.pop %v729
        %v731 = vadd.f32 %v730, 1.0
        %v732 = vrcp.pop %v731
        %v733 = vmul.f32 1.0, %v732
        %v734 = vmul.f32 %v725, %v733
        %v735 = vld [vmem:[%s3] sm:$0xf]
        %v736 = vld [vmem:[%s4] sm:$0x1]
        %v738 = vlaneseq
        %v739 = vshrl.u32 %v738, 7
        %v740 = vsub.s32 0, %v739
        %v741 = vrot.slane %v736, %v740
        %vm743 = vcmask 31744
        %v745 = vsel %vm743, %v734, 0
        %vm747 = vcmask 1043456
        %v749 = vsel %vm747, %v735, 0
        %751 = vmatprep.subr.mxu0 0.0
        %752 = vmatpush1.msra.mxu0 0.0
        %753 = vmatprep.subr.mxu0 0.0
        %754 = vmatpush1.msra.mxu0 0.0
        %755 = vmatprep.subr.mxu0 0.0
        %756 = vmatpush1.msra.mxu0 0.0
        %757 = vmatprep.subr.mxu0 0.0
        %758 = vmatpush1.msra.mxu0 0.0
        %759 = vmatprep.subr.mxu0 0.0
        %760 = vmatpush1.msra.mxu0 0.0
        %761 = vmatprep.subr.mxu0 0.0
        %762 = vmatpush1.msra.mxu0 0.0
        %763 = vmatprep.subr.mxu0 0.0
        %764 = vmatpush1.msra.mxu0 0.0
        %765 = vmatprep.subr.mxu0 0.0
        %766 = vmatpush1.msra.mxu0 0.0
        %767 = vmatprep.subr.mxu0 0.0
        %768 = vmatpush1.msra.mxu0 0.0
        %769 = vmatprep.subr.mxu0 0.0
        %770 = vmatpush1.msra.mxu0 0.0
        %771 = vmatprep.subr.mxu0 0.0
        %772 = vmatpush1.msra.mxu0 0.0
        %773 = vmatprep.subr.mxu0 0.0
        %774 = vmatpush1.msra.mxu0 0.0
        %775 = vmatprep.subr.mxu0 0.0
        %776 = vmatpush1.msra.mxu0 0.0
        %777 = vmatprep.subr.mxu0 0.0
        %778 = vmatpush1.msra.mxu0 0.0
        %779 = vmatprep.subr.mxu0 0.0
        %780 = vmatpush1.msra.mxu0 0.0
        %781 = vmatprep.subr.mxu0 0.0
        %782 = vmatpush1.msra.mxu0 %v749
        %783 = vmatprep.subr.mxu0 0.0
        %784 = vmatpush2.msra.mxu0 0.0
        %785 = vmatprep.subr.mxu0 0.0
        %786 = vmatpush2.msra.mxu0 0.0
        %787 = vmatprep.subr.mxu0 0.0
        %788 = vmatpush2.msra.mxu0 0.0
        %789 = vmatprep.subr.mxu0 0.0
        %790 = vmatpush2.msra.mxu0 0.0
        %791 = vmatprep.subr.mxu0 0.0
        %792 = vmatpush2.msra.mxu0 0.0
        %793 = vmatprep.subr.mxu0 0.0
        %794 = vmatpush2.msra.mxu0 0.0
        %795 = vmatprep.subr.mxu0 0.0
        %796 = vmatpush2.msra.mxu0 0.0
        %797 = vmatprep.subr.mxu0 0.0
        %798 = vmatpush2.msra.mxu0 0.0
        %799 = vmatprep.subr.mxu0 0.0
        %800 = vmatpush2.msra.mxu0 0.0
        %801 = vmatprep.subr.mxu0 0.0
        %802 = vmatpush2.msra.mxu0 0.0
        %803 = vmatprep.subr.mxu0 0.0
        %804 = vmatpush2.msra.mxu0 0.0
        %805 = vmatprep.subr.mxu0 0.0
        %806 = vmatpush2.msra.mxu0 0.0
        %807 = vmatprep.subr.mxu0 0.0
        %808 = vmatpush2.msra.mxu0 0.0
        %809 = vmatprep.subr.mxu0 0.0
        %810 = vmatpush2.msra.mxu0 0.0
        %811 = vmatprep.subr.mxu0 0.0
        %812 = vmatpush2.msra.mxu0 0.0
        %813 = vmatprep.subr.mxu0 0.0
        %814 = vmatpush2.msra.mxu0 0.0
        %815 = vmatprep.mubr.f32.mxu0 0.0
        %816 = vmatmul.mubr.f32.gmra.mxu0 %v745
        %v817 = vpop.f32.mrf.mxu0
        %v818 = vadd.f32 %v741, %v817
        %v819 = vpop.f32.mrf.mxu0
        %820 = vdwg.mxu0
        %v821 = vxor.u32 %v818, 2147483648
        %v822 = vmul.f32 %v821, 1.442695
        %v823 = vpow.pop %v822
        %v824 = vadd.f32 %v823, 1.0
        %v825 = vrcp.pop %v824
        %v826 = vmul.f32 1.0, %v825
        %v827 = vlaneseq
        %v828 = vshrl.u32 %v827, 7
        %v829 = vsub.s32 0, %v828
        %v830 = vrot.slane %v826, %v829
        %832 = vbcast.lane.b32.xlu0 %v830, 256
        %v833 = vpop.permute.xlu0 %832
        %s835 = sor.u32 256, 8
        %836 = vbcast.lane.b32.xlu0 %v830, %s835
        %v837 = vpop.permute.xlu0 %836
        %s839 = sor.u32 256, 16
        %840 = vbcast.lane.b32.xlu0 %v830, %s839
        %v841 = vpop.permute.xlu0 %840
        %s843 = sor.u32 256, 24
        %844 = vbcast.lane.b32.xlu0 %v830, %s843
        %v845 = vpop.permute.xlu0 %844
        %v846 = vlaneseq
        %v847 = vshrl.u32 %v846, 7
        %v848 = vsub.s32 1, %v847
        %v849 = vrot.slane %v826, %v848
        %851 = vbcast.lane.b32.xlu0 %v849, 256
        %v852 = vpop.permute.xlu0 %851
        %s854 = sor.u32 256, 8
        %855 = vbcast.lane.b32.xlu0 %v849, %s854
        %v856 = vpop.permute.xlu0 %855
        %s858 = sor.u32 256, 16
        %859 = vbcast.lane.b32.xlu0 %v849, %s858
        %v860 = vpop.permute.xlu0 %859
        %s862 = sor.u32 256, 24
        %863 = vbcast.lane.b32.xlu0 %v849, %s862
        %v864 = vpop.permute.xlu0 %863
        %v865 = vlaneseq
        %v866 = vshrl.u32 %v865, 7
        %v867 = vsub.s32 2, %v866
        %v868 = vrot.slane %v826, %v867
        %870 = vbcast.lane.b32.xlu0 %v868, 256
        %v871 = vpop.permute.xlu0 %870
        %s873 = sor.u32 256, 8
        %874 = vbcast.lane.b32.xlu0 %v868, %s873
        %v875 = vpop.permute.xlu0 %874
        %s877 = sor.u32 256, 16
        %878 = vbcast.lane.b32.xlu0 %v868, %s877
        %v879 = vpop.permute.xlu0 %878
        %s881 = sor.u32 256, 24
        %882 = vbcast.lane.b32.xlu0 %v868, %s881
        %v883 = vpop.permute.xlu0 %882
        %v884 = vlaneseq
        %v885 = vshrl.u32 %v884, 7
        %v886 = vsub.s32 3, %v885
        %v887 = vrot.slane %v826, %v886
        %889 = vbcast.lane.b32.xlu0 %v887, 256
        %v890 = vpop.permute.xlu0 %889
        %s892 = sor.u32 256, 8
        %893 = vbcast.lane.b32.xlu0 %v887, %s892
        %v894 = vpop.permute.xlu0 %893
        %s896 = sor.u32 256, 16
        %897 = vbcast.lane.b32.xlu0 %v887, %s896
        %v898 = vpop.permute.xlu0 %897
        %s900 = sor.u32 256, 24
        %901 = vbcast.lane.b32.xlu0 %v887, %s900
        %v902 = vpop.permute.xlu0 %901
        %v903 = vlaneseq
        %v904 = vshrl.u32 %v903, 7
        %v905 = vsub.s32 4, %v904
        %v906 = vrot.slane %v826, %v905
        %908 = vbcast.lane.b32.xlu0 %v906, 256
        %v909 = vpop.permute.xlu0 %908
        %s911 = sor.u32 256, 8
        %912 = vbcast.lane.b32.xlu0 %v906, %s911
        %v913 = vpop.permute.xlu0 %912
        %s915 = sor.u32 256, 16
        %916 = vbcast.lane.b32.xlu0 %v906, %s915
        %v917 = vpop.permute.xlu0 %916
        %s919 = sor.u32 256, 24
        %920 = vbcast.lane.b32.xlu0 %v906, %s919
        %v921 = vpop.permute.xlu0 %920
        %v922 = vlaneseq
        %v923 = vshrl.u32 %v922, 7
        %v924 = vsub.s32 5, %v923
        %v925 = vrot.slane %v826, %v924
        %927 = vbcast.lane.b32.xlu0 %v925, 256
        %v928 = vpop.permute.xlu0 %927
        %s930 = sor.u32 256, 8
        %931 = vbcast.lane.b32.xlu0 %v925, %s930
        %v932 = vpop.permute.xlu0 %931
        %s934 = sor.u32 256, 16
        %935 = vbcast.lane.b32.xlu0 %v925, %s934
        %v936 = vpop.permute.xlu0 %935
        %s938 = sor.u32 256, 24
        %939 = vbcast.lane.b32.xlu0 %v925, %s938
        %v940 = vpop.permute.xlu0 %939
        %v941 = vlaneseq
        %v942 = vshrl.u32 %v941, 7
        %v943 = vsub.s32 6, %v942
        %v944 = vrot.slane %v826, %v943
        %946 = vbcast.lane.b32.xlu0 %v944, 256
        %v947 = vpop.permute.xlu0 %946
        %s949 = sor.u32 256, 8
        %950 = vbcast.lane.b32.xlu0 %v944, %s949
        %v951 = vpop.permute.xlu0 %950
        %s953 = sor.u32 256, 16
        %954 = vbcast.lane.b32.xlu0 %v944, %s953
        %v955 = vpop.permute.xlu0 %954
        %s957 = sor.u32 256, 24
        %958 = vbcast.lane.b32.xlu0 %v944, %s957
        %v959 = vpop.permute.xlu0 %958
        %v960 = vlaneseq
        %v961 = vshrl.u32 %v960, 7
        %v962 = vsub.s32 7, %v961
        %v963 = vrot.slane %v826, %v962
        %965 = vbcast.lane.b32.xlu0 %v963, 256
        %v966 = vpop.permute.xlu0 %965
        %s968 = sor.u32 256, 8
        %969 = vbcast.lane.b32.xlu0 %v963, %s968
        %v970 = vpop.permute.xlu0 %969
        %s972 = sor.u32 256, 16
        %973 = vbcast.lane.b32.xlu0 %v963, %s972
        %v974 = vpop.permute.xlu0 %973
        %s976 = sor.u32 256, 24
        %977 = vbcast.lane.b32.xlu0 %v963, %s976
        %v978 = vpop.permute.xlu0 %977
        %v979 = vmul.f32 %v246, %v833
        %v980 = vmul.f32 %v247, %v833
        %v981 = vmul.f32 %v248, %v837
        %v982 = vmul.f32 %v249, %v837
        %v983 = vmul.f32 %v250, %v841
        %v984 = vmul.f32 %v251, %v841
        %v985 = vmul.f32 %v252, %v845
        %v986 = vmul.f32 %v253, %v845
        %v987 = vmul.f32 %v254, %v852
        %v988 = vmul.f32 %v255, %v852
        %v989 = vmul.f32 %v256, %v856
        %v990 = vmul.f32 %v257, %v856
        %v991 = vmul.f32 %v258, %v860
        %v992 = vmul.f32 %v259, %v860
        %v993 = vmul.f32 %v260, %v864
        %v994 = vmul.f32 %v261, %v864
        %v995 = vmul.f32 %v262, %v871
        %v996 = vmul.f32 %v263, %v871
        %v997 = vmul.f32 %v264, %v875
        %v998 = vmul.f32 %v265, %v875
        %v999 = vmul.f32 %v266, %v879
        %v1000 = vmul.f32 %v267, %v879
        %v1001 = vmul.f32 %v268, %v883
        %v1002 = vmul.f32 %v269, %v883
        %v1003 = vmul.f32 %v270, %v890
        %v1004 = vmul.f32 %v271, %v890
        %v1005 = vmul.f32 %v272, %v894
        %v1006 = vmul.f32 %v273, %v894
        %v1007 = vmul.f32 %v274, %v898
        %v1008 = vmul.f32 %v275, %v898
        %v1009 = vmul.f32 %v276, %v902
        %v1010 = vmul.f32 %v277, %v902
        %v1011 = vmul.f32 %v278, %v909
        %v1012 = vmul.f32 %v279, %v909
        %v1013 = vmul.f32 %v280, %v913
        %v1014 = vmul.f32 %v281, %v913
        %v1015 = vmul.f32 %v282, %v917
        %v1016 = vmul.f32 %v283, %v917
        %v1017 = vmul.f32 %v284, %v921
        %v1018 = vmul.f32 %v285, %v921
        %v1019 = vmul.f32 %v286, %v928
        %v1020 = vmul.f32 %v287, %v928
        %v1021 = vmul.f32 %v288, %v932
        %v1022 = vmul.f32 %v289, %v932
        %v1023 = vmul.f32 %v290, %v936
        %v1024 = vmul.f32 %v291, %v936
        %v1025 = vmul.f32 %v292, %v940
        %v1026 = vmul.f32 %v293, %v940
        %v1027 = vmul.f32 %v294, %v947
        %v1028 = vmul.f32 %v295, %v947
        %v1029 = vmul.f32 %v296, %v951
        %v1030 = vmul.f32 %v297, %v951
        %v1031 = vmul.f32 %v298, %v955
        %v1032 = vmul.f32 %v299, %v955
        %v1033 = vmul.f32 %v300, %v959
        %v1034 = vmul.f32 %v301, %v959
        %v1035 = vmul.f32 %v302, %v966
        %v1036 = vmul.f32 %v303, %v966
        %v1037 = vmul.f32 %v304, %v970
        %v1038 = vmul.f32 %v305, %v970
        %v1039 = vmul.f32 %v306, %v974
        %v1040 = vmul.f32 %v307, %v974
        %v1041 = vmul.f32 %v308, %v978
        %v1042 = vmul.f32 %v309, %v978
        %1043 = vst [vmem:[%s243] sm:$0xff] %v979
        %1044 = vst [vmem:[%s243 + $0x8] sm:$0xff] %v980
        %1045 = vst [vmem:[%s243 + $0x10] sm:$0xff] %v981
        %1046 = vst [vmem:[%s243 + $0x18] sm:$0xff] %v982
        %1047 = vst [vmem:[%s243 + $0x20] sm:$0xff] %v983
        %1048 = vst [vmem:[%s243 + $0x28] sm:$0xff] %v984
        %1049 = vst [vmem:[%s243 + $0x30] sm:$0xff] %v985
        %1050 = vst [vmem:[%s243 + $0x38] sm:$0xff] %v986
        %1051 = vst [vmem:[%s243 + $0x40] sm:$0xff] %v987
        %1052 = vst [vmem:[%s243 + $0x48] sm:$0xff] %v988
        %1053 = vst [vmem:[%s243 + $0x50] sm:$0xff] %v989
        %1054 = vst [vmem:[%s243 + $0x58] sm:$0xff] %v990
        %1055 = vst [vmem:[%s243 + $0x60] sm:$0xff] %v991
        %1056 = vst [vmem:[%s243 + $0x68] sm:$0xff] %v992
        %1057 = vst [vmem:[%s243 + $0x70] sm:$0xff] %v993
        %1058 = vst [vmem:[%s243 + $0x78] sm:$0xff] %v994
        %1059 = vst [vmem:[%s243 + $0x80] sm:$0xff] %v995
        %1060 = vst [vmem:[%s243 + $0x88] sm:$0xff] %v996
        %1061 = vst [vmem:[%s243 + $0x90] sm:$0xff] %v997
        %1062 = vst [vmem:[%s243 + $0x98] sm:$0xff] %v998
        %1063 = vst [vmem:[%s243 + $0xa0] sm:$0xff] %v999
        %1064 = vst [vmem:[%s243 + $0xa8] sm:$0xff] %v1000
        %1065 = vst [vmem:[%s243 + $0xb0] sm:$0xff] %v1001
        %1066 = vst [vmem:[%s243 + $0xb8] sm:$0xff] %v1002
        %1067 = vst [vmem:[%s243 + $0xc0] sm:$0xff] %v1003
        %1068 = vst [vmem:[%s243 + $0xc8] sm:$0xff] %v1004
        %1069 = vst [vmem:[%s243 + $0xd0] sm:$0xff] %v1005
        %1070 = vst [vmem:[%s243 + $0xd8] sm:$0xff] %v1006
        %1071 = vst [vmem:[%s243 + $0xe0] sm:$0xff] %v1007
        %1072 = vst [vmem:[%s243 + $0xe8] sm:$0xff] %v1008
        %1073 = vst [vmem:[%s243 + $0xf0] sm:$0xff] %v1009
        %1074 = vst [vmem:[%s243 + $0xf8] sm:$0xff] %v1010
        %1075 = vst [vmem:[%s243 + $0x100] sm:$0xff] %v1011
        %1076 = vst [vmem:[%s243 + $0x108] sm:$0xff] %v1012
        %1077 = vst [vmem:[%s243 + $0x110] sm:$0xff] %v1013
        %1078 = vst [vmem:[%s243 + $0x118] sm:$0xff] %v1014
        %1079 = vst [vmem:[%s243 + $0x120] sm:$0xff] %v1015
        %1080 = vst [vmem:[%s243 + $0x128] sm:$0xff] %v1016
        %1081 = vst [vmem:[%s243 + $0x130] sm:$0xff] %v1017
        %1082 = vst [vmem:[%s243 + $0x138] sm:$0xff] %v1018
        %1083 = vst [vmem:[%s243 + $0x140] sm:$0xff] %v1019
        %1084 = vst [vmem:[%s243 + $0x148] sm:$0xff] %v1020
        %1085 = vst [vmem:[%s243 + $0x150] sm:$0xff] %v1021
        %1086 = vst [vmem:[%s243 + $0x158] sm:$0xff] %v1022
        %1087 = vst [vmem:[%s243 + $0x160] sm:$0xff] %v1023
        %1088 = vst [vmem:[%s243 + $0x168] sm:$0xff] %v1024
        %1089 = vst [vmem:[%s243 + $0x170] sm:$0xff] %v1025
        %1090 = vst [vmem:[%s243 + $0x178] sm:$0xff] %v1026
        %1091 = vst [vmem:[%s243 + $0x180] sm:$0xff] %v1027
        %1092 = vst [vmem:[%s243 + $0x188] sm:$0xff] %v1028
        %1093 = vst [vmem:[%s243 + $0x190] sm:$0xff] %v1029
        %1094 = vst [vmem:[%s243 + $0x198] sm:$0xff] %v1030
        %1095 = vst [vmem:[%s243 + $0x1a0] sm:$0xff] %v1031
        %1096 = vst [vmem:[%s243 + $0x1a8] sm:$0xff] %v1032
        %1097 = vst [vmem:[%s243 + $0x1b0] sm:$0xff] %v1033
        %1098 = vst [vmem:[%s243 + $0x1b8] sm:$0xff] %v1034
        %1099 = vst [vmem:[%s243 + $0x1c0] sm:$0xff] %v1035
        %1100 = vst [vmem:[%s243 + $0x1c8] sm:$0xff] %v1036
        %1101 = vst [vmem:[%s243 + $0x1d0] sm:$0xff] %v1037
        %1102 = vst [vmem:[%s243 + $0x1d8] sm:$0xff] %v1038
        %1103 = vst [vmem:[%s243 + $0x1e0] sm:$0xff] %v1039
        %1104 = vst [vmem:[%s243 + $0x1e8] sm:$0xff] %v1040
        %1105 = vst [vmem:[%s243 + $0x1f0] sm:$0xff] %v1041
        %1106 = vst [vmem:[%s243 + $0x1f8] sm:$0xff] %v1042
        %s1107 = sand.u32 %s140, 1
        %s1108 = scalar_lea.sflag [#allocation4], %s1107
        %s1109 = sand.u32 %s140, 1
        %s1110 = smul.addr %s1109, 512
        %s1111 = scalar_lea.vmem [#allocation5], %s1110
        // Predicated region
        $region45: #{tpu_custom_call.1} parent=39 // pred_check
          %p1112 = pneg %p150
        $region46: #{tpu_custom_call.1} parent=39 // pred_check_branch
          %1114 = sbr.rel (%p1112) target = $region48
        $region47: #{tpu_custom_call.1} parent=39 // pred_region
          %s1115 = smul.u32 8, %s22
          %s1117 = ssub.s32 8192, 8192
          %1118 = vsyncadd %s1108, %s1117
          %s1119 = smul.addr %s1115, 8
          %s1120 = smul.addr %s1119, 128
          %s1121 = scalar_lea.hbm %s5, %s1120
          %s1122 = sshll.u32 %s1111, 4
          %s1123 = int_to_ptr.vmem [resolvable:$true] %s1122
          %1128 = dma.vmem_to_hbm [thread:$0]  %s1123, 8192, %s1121, %s1108, 256, 256, 16
        $region48: #{tpu_custom_call.1} parent=39 // pred_fallthru
          _
      $region40: #{tpu_custom_call.1} parent=5 // pred_fallthru
        _
      %p1129 = scmp.le.s32.totalorder 2, %s17
      // Predicated region
      $region49: #{tpu_custom_call.1} parent=5 // pred_check
        %p1130 = pneg %p1129
      $region50: #{tpu_custom_call.1} parent=5 // pred_check_branch
        %1132 = sbr.rel (%p1130) target = $region52
      $region51: #{tpu_custom_call.1} parent=5 // pred_region
        %s1133 = ssub.s32 %s17, 2
        // Predicated region
        $region53: #{tpu_custom_call.1} parent=51 // pred_check
          %p1134 = pneg %p156
        $region54: #{tpu_custom_call.1} parent=51 // pred_check_branch
          %1136 = sbr.rel (%p1134) target = $region56
        $region55: #{tpu_custom_call.1} parent=51 // pred_region
          %s1137 = sand.u32 %s141, 1
          %s1138 = scalar_lea.sflag [#allocation4], %s1137
          %s1139 = sand.u32 %s141, 1
          %s1140 = smul.addr %s1139, 512
          %s1141 = scalar_lea.vmem [#allocation5], %s1140
          %1142 = dma.done %s1138, 8192
        $region56: #{tpu_custom_call.1} parent=51 // pred_fallthru
          _
      $region52: #{tpu_custom_call.1} parent=5 // pred_fallthru
        _
    $region6: #{tpu_custom_call.1} parent=1 // loop_footer
      %s21 = sadd.s32 1, %s17
    $region7: #{tpu_custom_call.1} parent=1 // loop_footer_branch
      %16 = sbr.rel target = $region3
    $region8: #{tpu_custom_call.1} parent=1 // loop_exit
      _
    %1143 = vsyncpa [#allocation3], 1
    %s1144 = scalar_lea.sflag [#allocation3], 1
    %1145 = vsyncpa %s1144, 1
    %1146 = vsyncpa [#allocation4], 1
    %s1147 = scalar_lea.sflag [#allocation4], 1
    %1148 = vsyncpa %s1147, 1

</llo_original>
